<compile_context>
chip_gen: v7x
topology: tpu7x:2x2x1
jax: 0.10.0
libtpu: 0.0.40
codegen_flags: <defaults>
</compile_context>

<pallas_src>
import functools

import jax
import jax.numpy as jnp
from jax.experimental import pallas as pl
from jax.experimental.pallas import tpu as pltpu


# ----------------------------------------------------------------------------
# Small helpers
# ----------------------------------------------------------------------------
def _round_up(x, m):
    return (x + m - 1) // m * m


def _row_tiles(m):
    """Row-block size for (rows, lanes) elementwise kernels."""
    if m <= 1024:
        return m, m, 1          # single full block (block dim == array dim is legal)
    bm = 512
    mp = _round_up(m, bm)
    return bm, mp, mp // bm


def _lane_fold(m, c):
    """Fold factor so the lane (last) dim becomes >=128 for elementwise kernels."""
    if c < 128 and 128 % c == 0 and m % (128 // c) == 0:
        return 128 // c
    return 1


# ----------------------------------------------------------------------------
# GEMM kernels: bf16 operands, f32 accumulation
#   _gemm_kernel        : optional fused bias / ReLU (used by the FC layer)
#   _gemm_stats_kernel  : fused per-channel sum / sum-of-squares (used by convs,
#                         feeds BatchNorm without re-reading the activation)
# ----------------------------------------------------------------------------
def _gemm_kernel(*refs, has_bias, relu):
    if has_bias:
        a_ref, b_ref, bias_ref, o_ref = refs
    else:
        a_ref, b_ref, o_ref = refs
        bias_ref = None
    acc = jnp.dot(a_ref[...], b_ref[...], preferred_element_type=jnp.float32)
    if has_bias:
        acc = acc + bias_ref[...]
    if relu:
        acc = jnp.maximum(acc, 0.0)
    o_ref[...] = acc.astype(o_ref.dtype)


def _gemm_stats_kernel(a_ref, b_ref, o_ref, sum_ref, sq_ref):
    acc = jnp.dot(a_ref[...], b_ref[...], preferred_element_type=jnp.float32)
    o_ref[...] = acc.astype(o_ref.dtype)

    # Stats accumulators are resident across the inner (M-tile) grid axis.
    @pl.when(pl.program_id(1) == 0)
    def _():
        sum_ref[...] = jnp.zeros_like(sum_ref)
        sq_ref[...] = jnp.zeros_like(sq_ref)

    sum_ref[...] += jnp.sum(acc, axis=0, keepdims=True)
    sq_ref[...] += jnp.sum(acc * acc, axis=0, keepdims=True)


def matmul(a, b, bias=None, relu=False, out_dtype=jnp.float32,
           with_stats=False, tile_m=512, tile_n=256):
    """(M,K)@(K,N) on the MXU. Full-K blocks -> no reduction grid axis, no K pad.

    Grid is (N-tiles, M-tiles): the weight block (K, tn) stays resident in VMEM
    across all M tiles; when `with_stats`, per-channel sum / sumsq accumulate
    into resident (1, tn) outputs across the inner (arbitrary) M axis.
    """
    M, K = a.shape
    K2, N = b.shape
    assert K == K2
    assert not (with_stats and (bias is not None or relu))
    a = a.astype(jnp.bfloat16)
    b = b.astype(jnp.bfloat16)

    if M <= tile_m:
        tm, Mp = M, M
    else:
        tm = tile_m
        Mp = _round_up(M, tm)
        a = jnp.pad(a, ((0, Mp - M), (0, 0)))         # zero rows: no stats impact
    if N <= tile_n:
        tn, Np = N, N
    else:
        tn = tile_n
        Np = _round_up(N, tn)
        b = jnp.pad(b, ((0, 0), (0, Np - N)))

    grid = (Np // tn, Mp // tm)
    a_spec = pl.BlockSpec((tm, K), lambda j, i: (i, 0))
    b_spec = pl.BlockSpec((K, tn), lambda j, i: (0, j))
    o_spec = pl.BlockSpec((tm, tn), lambda j, i: (i, j))

    if with_stats:
        y, s, sq = pl.pallas_call(
            _gemm_stats_kernel,
            out_shape=(jax.ShapeDtypeStruct((Mp, Np), out_dtype),
                       jax.ShapeDtypeStruct((1, Np), jnp.float32),
                       jax.ShapeDtypeStruct((1, Np), jnp.float32)),
            grid_spec=pltpu.PrefetchScalarGridSpec(
                num_scalar_prefetch=0,
                grid=grid,
                in_specs=[a_spec, b_spec],
                out_specs=(o_spec,
                           pl.BlockSpec((1, tn), lambda j, i: (0, j)),
                           pl.BlockSpec((1, tn), lambda j, i: (0, j)))),
            compiler_params=pltpu.CompilerParams(
                dimension_semantics=("parallel", "arbitrary")),
        )(a, b)
        if (Mp, Np) != (M, N):
            y = y[:M, :N]
            s = s[:, :N]
            sq = sq[:, :N]
        return y, s, sq

    args = [a, b]
    in_specs = [a_spec, b_spec]
    if bias is not None:
        bias2 = bias.reshape(1, -1).astype(jnp.float32)
        if Np != N:
            bias2 = jnp.pad(bias2, ((0, 0), (0, Np - N)))
        args.append(bias2)
        in_specs.append(pl.BlockSpec((1, tn), lambda j, i: (0, j)))

    out = pl.pallas_call(
        functools.partial(_gemm_kernel, has_bias=bias is not None, relu=relu),
        out_shape=jax.ShapeDtypeStruct((Mp, Np), out_dtype),
        grid_spec=pltpu.PrefetchScalarGridSpec(
            num_scalar_prefetch=0,
            grid=grid,
            in_specs=in_specs,
            out_specs=o_spec),
        compiler_params=pltpu.CompilerParams(
            dimension_semantics=("parallel", "parallel")),
    )(*args)
    if (Mp, Np) != (M, N):
        out = out[:M, :N]
    return out


# ----------------------------------------------------------------------------
# BatchNorm: turn fused GEMM moments into a per-channel affine (scale, shift)
# ----------------------------------------------------------------------------
def bn_scale_shift(sums, sqs, count, gamma, beta, eps=1e-5):
    """Training-mode batch statistics (PyTorch default forward) -> affine."""
    C = gamma.shape[0]
    mean = sums[:, :C] / count
    var = jnp.maximum(sqs[:, :C] / count - mean * mean, 0.0)   # biased variance
    scale = gamma.reshape(1, C).astype(jnp.float32) * jax.lax.rsqrt(var + eps)
    shift = beta.reshape(1, C).astype(jnp.float32) - mean * scale
    return scale, shift


# ----------------------------------------------------------------------------
# BatchNorm apply: fused scale*x+shift (+ affine'd residual) (+ ReLU), row-tiled
# ----------------------------------------------------------------------------
def _bn_apply_kernel(*refs, relu, has_res, res_affine):
    if has_res and res_affine:
        x_ref, s_ref, t_ref, r_ref, rs_ref, rt_ref, o_ref = refs
    elif has_res:
        x_ref, s_ref, t_ref, r_ref, o_ref = refs
    else:
        x_ref, s_ref, t_ref, o_ref = refs
    y = x_ref[...].astype(jnp.float32) * s_ref[...] + t_ref[...]
    if has_res:
        r = r_ref[...].astype(jnp.float32)
        if res_affine:
            r = r * rs_ref[...] + rt_ref[...]
        y = y + r
    if relu:
        y = jnp.maximum(y, 0.0)
    o_ref[...] = y.astype(o_ref.dtype)


def bn_apply(x2d, scale, shift, residual=None, res_scale=None, res_shift=None,
             relu=True, out_dtype=jnp.bfloat16):
    M, C = x2d.shape
    fold = _lane_fold(M, C)               # lane-dense (>=128) last dim for stores
    Mr, Cr = M // fold, C * fold

    def fold_rows(v):
        return v.reshape(Mr, Cr)

    def fold_vec(v):
        return jnp.tile(v, (1, fold)) if fold > 1 else v

    has_res = residual is not None
    res_affine = res_scale is not None
    args = [fold_rows(x2d), fold_vec(scale), fold_vec(shift)]
    if has_res:
        args.append(fold_rows(residual))
        if res_affine:
            args += [fold_vec(res_scale), fold_vec(res_shift)]

    bm, Mp, steps = _row_tiles(Mr)
    if Mp != Mr:
        args = [jnp.pad(v, ((0, Mp - Mr), (0, 0))) if v.shape[0] != 1 else v
                for v in args]

    in_specs = [pl.BlockSpec((1, Cr), lambda i: (0, 0)) if v.shape[0] == 1
                else pl.BlockSpec((bm, Cr), lambda i: (i, 0)) for v in args]

    out = pl.pallas_call(
        functools.partial(_bn_apply_kernel, relu=relu, has_res=has_res,
                          res_affine=res_affine),
        out_shape=jax.ShapeDtypeStruct((Mp, Cr), out_dtype),
        grid_spec=pltpu.PrefetchScalarGridSpec(
            num_scalar_prefetch=0,
            grid=(steps,),
            in_specs=in_specs,
            out_specs=pl.BlockSpec((bm, Cr), lambda i: (i, 0))),
        compiler_params=pltpu.CompilerParams(
            dimension_semantics=("parallel",)),
    )(*args)
    if Mp != Mr:
        out = out[:Mr]
    return out.reshape(M, C)


# ----------------------------------------------------------------------------
# MaxPool: shifted windows passed as separate inputs, max tree in-kernel, tiled
# ----------------------------------------------------------------------------
def _maxpool_kernel(*refs):
    o_ref = refs[-1]
    m = refs[0][...].astype(jnp.float32)
    for r in refs[1:-1]:
        m = jnp.maximum(m, r[...].astype(jnp.float32))
    o_ref[...] = m.astype(o_ref.dtype)


def _extract_patches(x, k, stride, pad, pad_value=0.0):
    """x: (N,H,W,C) -> list of k*k shifted strided views of shape (N,Ho,Wo,C)."""
    N, H, W, C = x.shape
    if pad > 0:
        x = jnp.pad(x, ((0, 0), (pad, pad), (pad, pad), (0, 0)),
                    constant_values=pad_value)
    Ho = (H + 2 * pad - k) // stride + 1
    Wo = (W + 2 * pad - k) // stride + 1
    patches = []
    for kh in range(k):
        for kw in range(k):
            patches.append(
                x[:, kh:kh + Ho * stride:stride, kw:kw + Wo * stride:stride, :])
    return patches, Ho, Wo


def maxpool2d(x, k=3, stride=2, pad=1):
    N, H, W, C = x.shape
    patches, Ho, Wo = _extract_patches(x, k, stride, pad, pad_value=-jnp.inf)
    M = N * Ho * Wo
    fold = _lane_fold(M, C)
    Mr, Cr = M // fold, C * fold
    flats = [p.reshape(Mr, Cr) for p in patches]
    bm, Mp, steps = _row_tiles(Mr)
    if Mp != Mr:
        flats = [jnp.pad(f, ((0, Mp - Mr), (0, 0)), constant_values=-jnp.inf)
                 for f in flats]
    out = pl.pallas_call(
        _maxpool_kernel,
        out_shape=jax.ShapeDtypeStruct((Mp, Cr), x.dtype),
        grid_spec=pltpu.PrefetchScalarGridSpec(
            num_scalar_prefetch=0,
            grid=(steps,),
            in_specs=[pl.BlockSpec((bm, Cr), lambda i: (i, 0)) for _ in flats],
            out_specs=pl.BlockSpec((bm, Cr), lambda i: (i, 0))),
        compiler_params=pltpu.CompilerParams(
            dimension_semantics=("parallel",)),
    )(*flats)
    if Mp != Mr:
        out = out[:Mr]
    return out.reshape(N, Ho, Wo, C)


# ----------------------------------------------------------------------------
# Global average pool (channel-tiled)
# ----------------------------------------------------------------------------
def _avgpool_kernel(x_ref, o_ref):
    o_ref[...] = jnp.mean(x_ref[...].astype(jnp.float32), axis=1).astype(o_ref.dtype)


def global_avgpool(x):
    N, H, W, C = x.shape
    x3 = x.reshape(N, H * W, C)
    tc = 128 if C % 128 == 0 else C
    return pl.pallas_call(
        _avgpool_kernel,
        out_shape=jax.ShapeDtypeStruct((N, C), jnp.bfloat16),
        grid_spec=pltpu.PrefetchScalarGridSpec(
            num_scalar_prefetch=0,
            grid=(C // tc,),
            in_specs=[pl.BlockSpec((N, H * W, tc), lambda j: (0, 0, j))],
            out_specs=pl.BlockSpec((N, tc), lambda j: (0, j))),
        compiler_params=pltpu.CompilerParams(
            dimension_semantics=("parallel",)),
    )(x3)


# ----------------------------------------------------------------------------
# Convolution via im2col GEMM (bf16), optional fused BN moments
# ----------------------------------------------------------------------------
def conv2d(x, w, stride, pad, with_stats=False):
    """x: (N,H,W,Cin) bf16 NHWC.  w: (Cout,Cin,Kh,Kw) PyTorch layout.  No bias."""
    Cout, Cin, Kh, Kw = w.shape
    N = x.shape[0]
    patches, Ho, Wo = _extract_patches(x, Kh, stride, pad, 0.0)
    M = N * Ho * Wo
    if len(patches) == 1:
        a = patches[0].reshape(M, Cin)
    else:
        a = jnp.concatenate([p.reshape(M, Cin) for p in patches], axis=1)
    b = jnp.transpose(w, (2, 3, 1, 0)).reshape(Kh * Kw * Cin, Cout)
    if with_stats:
        y, s, sq = matmul(a, b, out_dtype=jnp.bfloat16, with_stats=True)
        return y.reshape(N, Ho, Wo, Cout), s, sq
    y = matmul(a, b, out_dtype=jnp.bfloat16)
    return y.reshape(N, Ho, Wo, Cout)


# ----------------------------------------------------------------------------
# BasicBlock (channel_exp = 1) with fused bn2 + downsample-bn + residual + ReLU
# ----------------------------------------------------------------------------
def basic_block(x, blk):
    stride = blk["stride"]
    out1, s1, q1 = conv2d(x, blk["conv1_w"], stride=stride, pad=1, with_stats=True)
    N, Ho, Wo, C = out1.shape
    M = N * Ho * Wo

    sc1, sh1 = bn_scale_shift(s1, q1, M, blk["bn1_g"], blk["bn1_b"])
    h = bn_apply(out1.reshape(M, C), sc1, sh1, relu=True)

    out2, s2, q2 = conv2d(h.reshape(N, Ho, Wo, C), blk["conv2_w"],
                          stride=1, pad=1, with_stats=True)
    out2 = out2.reshape(M, C)
    sc2, sh2 = bn_scale_shift(s2, q2, M, blk["bn2_g"], blk["bn2_b"])

    if "ds_w" in blk:
        idt, sd, qd = conv2d(x, blk["ds_w"], stride=stride, pad=0, with_stats=True)
        idt = idt.reshape(M, C)
        scd, shd = bn_scale_shift(sd, qd, M, blk["ds_g"], blk["ds_b"])
        y = bn_apply(out2, sc2, sh2, residual=idt, res_scale=scd, res_shift=shd,
                     relu=True)
    else:
        y = bn_apply(out2, sc2, sh2, residual=x.reshape(M, C), relu=True)
    return y.reshape(N, Ho, Wo, C)


# ----------------------------------------------------------------------------
# Full ResNet forward
# ----------------------------------------------------------------------------
def resnet_forward(params, x_nchw, include_top=True):
    x = jnp.transpose(x_nchw, (0, 2, 3, 1)).astype(jnp.bfloat16)   # NCHW -> NHWC
    x, s, q = conv2d(x, params["conv1_w"], stride=2, pad=3, with_stats=True)
    N, H, W, C = x.shape
    M = N * H * W
    sc, sh = bn_scale_shift(s, q, M, params["bn1_g"], params["bn1_b"])
    x = bn_apply(x.reshape(M, C), sc, sh, relu=True).reshape(N, H, W, C)
    x = maxpool2d(x, k=3, stride=2, pad=1)
    for layer in params["layers"]:
        for blk in layer:
            x = basic_block(x, blk)
    if include_top:
        pooled = global_avgpool(x)                                   # (N, 512)
        logits = matmul(pooled, params["fc_w"].T, bias=params["fc_b"],
                        out_dtype=jnp.float32)                       # fused bias
        return logits
    return x


# ----------------------------------------------------------------------------
# Deterministic parameter construction (kaiming-normal fan_out for convs)
# ----------------------------------------------------------------------------
def _kaiming(key, shape):
    fan_out = shape[0] * shape[2] * shape[3]
    std = (2.0 / fan_out) ** 0.5
    return std * jax.random.normal(key, shape, dtype=jnp.float32)


def make_resnet_params(key, blocks_num, num_classes=10):
    keys = iter(jax.random.split(key, 256))
    params = {
        "conv1_w": _kaiming(next(keys), (64, 3, 7, 7)),
        "bn1_g": jnp.ones((64,), jnp.float32),
        "bn1_b": jnp.zeros((64,), jnp.float32),
    }
    in_ch = 64
    layers = []
    for out_ch, n_blocks, first_stride in zip([64, 128, 256, 512],
                                              blocks_num, [1, 2, 2, 2]):
        layer = []
        for bi in range(n_blocks):
            s = first_stride if bi == 0 else 1
            blk = {
                "stride": s,
                "conv1_w": _kaiming(next(keys), (out_ch, in_ch, 3, 3)),
                "bn1_g": jnp.ones((out_ch,), jnp.float32),
                "bn1_b": jnp.zeros((out_ch,), jnp.float32),
                "conv2_w": _kaiming(next(keys), (out_ch, out_ch, 3, 3)),
                "bn2_g": jnp.ones((out_ch,), jnp.float32),
                "bn2_b": jnp.zeros((out_ch,), jnp.float32),
            }
            if s != 1 or in_ch != out_ch:    # downsample branch (1x1 conv + BN)
                blk["ds_w"] = _kaiming(next(keys), (out_ch, in_ch, 1, 1))
                blk["ds_g"] = jnp.ones((out_ch,), jnp.float32)
                blk["ds_b"] = jnp.zeros((out_ch,), jnp.float32)
            layer.append(blk)
            in_ch = out_ch
        layers.append(layer)
    params["layers"] = layers
    params["fc_w"] = 0.01 * jax.random.normal(next(keys), (num_classes, 512),
                                              dtype=jnp.float32)
    params["fc_b"] = jnp.zeros((num_classes,), jnp.float32)
    return params


if __name__ == "__main__":
    key = jax.random.PRNGKey(0)
    pkey, xkey = jax.random.split(key)
    num_classes = 10
    params = make_resnet_params(pkey, blocks_num=[1, 1, 1, 1],
                                num_classes=num_classes)
    # PyTorch-style NCHW input: batch=2, channels=3 (conv1 expects 3), spatial=16
    x = jax.random.normal(xkey, (2, 3, 16, 16), dtype=jnp.float32)
    out = resnet_forward(params, x, include_top=True)
    out = jax.block_until_ready(out)
    assert out.shape == (2, num_classes), out.shape
    assert bool(jnp.all(jnp.isfinite(out)))
    print("KERNEL_OK")
</pallas_src>

<mosaic_0001>
module attributes {stable_mosaic.version = 11 : i64} {
  func.func @_gemm_stats_kernel(%arg0: i32, %arg1: i32, %arg2: memref<128x147xbf16, #tpu.memory_space<vmem>>, %arg3: memref<147x64xbf16, #tpu.memory_space<vmem>>, %arg4: memref<128x64xbf16, #tpu.memory_space<vmem>>, %arg5: memref<1x64xf32, #tpu.memory_space<vmem>>, %arg6: memref<1x64xf32, #tpu.memory_space<vmem>>) attributes {dimension_semantics = [#tpu.dimension_semantics<parallel>, #tpu.dimension_semantics<arbitrary>], iteration_bounds = array<i64: 1, 1>, scalar_prefetch = 0 : i64, scratch_operands = 0 : i64, tpu.core_type = #tpu.core_type<tc>, window_params = [{transform_indices = @transform_0, window_bounds = array<i64: 128, 147>}, {transform_indices = @transform_1, window_bounds = array<i64: 147, 64>}, {transform_indices = @transform_2, window_bounds = array<i64: 128, 64>}, {transform_indices = @transform_3, window_bounds = array<i64: 1, 64>}, {transform_indices = @transform_4, window_bounds = array<i64: 1, 64>}]} {
    %c0 = arith.constant 0 : index
    %c0_0 = arith.constant 0 : index
    %0 = vector.load %arg2[%c0, %c0_0] : memref<128x147xbf16, #tpu.memory_space<vmem>>, vector<128x147xbf16>
    %c0_1 = arith.constant 0 : index
    %c0_2 = arith.constant 0 : index
    %1 = vector.load %arg3[%c0_1, %c0_2] : memref<147x64xbf16, #tpu.memory_space<vmem>>, vector<147x64xbf16>
    %cst = arith.constant dense<0.000000e+00> : vector<128x64xf32>
    %2 = tpu.matmul %0, %1, %cst {dimension_numbers = #tpu.dot_dimension_numbers<[1], [0], [0], [1], [0, 0, 1, 1], [], []>} : vector<128x147xbf16>, vector<147x64xbf16>, vector<128x64xf32> -> vector<128x64xf32>
    %3 = arith.truncf %2 : vector<128x64xf32> to vector<128x64xbf16>
    %c0_3 = arith.constant 0 : index
    %c0_4 = arith.constant 0 : index
    %4 = vector.load %arg4[%c0_3, %c0_4] : memref<128x64xbf16, #tpu.memory_space<vmem>>, vector<128x64xbf16>
    tpu.vector_store %arg4[%c0_3, %c0_4], %3 {strides = array<i32>} : memref<128x64xbf16, #tpu.memory_space<vmem>>, vector<128x64xbf16>,
    %c0_i32 = arith.constant 0 : i32
    %5 = arith.cmpi eq, %arg1, %c0_i32 : i32
    %6 = arith.extui %5 : i1 to i32
    %c0_i32_5 = arith.constant 0 : i32
    %7 = arith.cmpi ne, %6, %c0_i32_5 : i32
    scf.if %7 {
      %cst_16 = arith.constant 0.000000e+00 : f32
      %19 = vector.broadcast %cst_16 : f32 to vector<1x64xf32>
      %c0_17 = arith.constant 0 : index
      %c0_18 = arith.constant 0 : index
      %20 = vector.load %arg5[%c0_17, %c0_18] : memref<1x64xf32, #tpu.memory_space<vmem>>, vector<1x64xf32>
      tpu.vector_store %arg5[%c0_17, %c0_18], %19 {strides = array<i32>} : memref<1x64xf32, #tpu.memory_space<vmem>>, vector<1x64xf32>,
      %cst_19 = arith.constant 0.000000e+00 : f32
      %21 = vector.broadcast %cst_19 : f32 to vector<1x64xf32>
      %c0_20 = arith.constant 0 : index
      %c0_21 = arith.constant 0 : index
      %22 = vector.load %arg6[%c0_20, %c0_21] : memref<1x64xf32, #tpu.memory_space<vmem>>, vector<1x64xf32>
      tpu.vector_store %arg6[%c0_20, %c0_21], %21 {strides = array<i32>} : memref<1x64xf32, #tpu.memory_space<vmem>>, vector<1x64xf32>,
    } else {
    }
    %c0_6 = arith.constant 0 : index
    %c0_7 = arith.constant 0 : index
    %8 = vector.load %arg5[%c0_6, %c0_7] : memref<1x64xf32, #tpu.memory_space<vmem>>, vector<1x64xf32>
    %cst_8 = arith.constant dense<0.000000e+00> : vector<64xf32>
    %9 = vector.multi_reduction <add>, %2, %cst_8 [0] : vector<128x64xf32> to vector<64xf32>
    %10 = vector.shape_cast %9 : vector<64xf32> to vector<1x64xf32>
    %11 = arith.addf %8, %10 : vector<1x64xf32>
    %c0_9 = arith.constant 0 : index
    %c0_10 = arith.constant 0 : index
    %12 = vector.load %arg5[%c0_9, %c0_10] : memref<1x64xf32, #tpu.memory_space<vmem>>, vector<1x64xf32>
    tpu.vector_store %arg5[%c0_9, %c0_10], %11 {strides = array<i32>} : memref<1x64xf32, #tpu.memory_space<vmem>>, vector<1x64xf32>,
    %c0_11 = arith.constant 0 : index
    %c0_12 = arith.constant 0 : index
    %13 = vector.load %arg6[%c0_11, %c0_12] : memref<1x64xf32, #tpu.memory_space<vmem>>, vector<1x64xf32>
    %14 = arith.mulf %2, %2 : vector<128x64xf32>
    %cst_13 = arith.constant dense<0.000000e+00> : vector<64xf32>
    %15 = vector.multi_reduction <add>, %14, %cst_13 [0] : vector<128x64xf32> to vector<64xf32>
    %16 = vector.shape_cast %15 : vector<64xf32> to vector<1x64xf32>
    %17 = arith.addf %13, %16 : vector<1x64xf32>
    %c0_14 = arith.constant 0 : index
    %c0_15 = arith.constant 0 : index
    %18 = vector.load %arg6[%c0_14, %c0_15] : memref<1x64xf32, #tpu.memory_space<vmem>>, vector<1x64xf32>
    tpu.vector_store %arg6[%c0_14, %c0_15], %17 {strides = array<i32>} : memref<1x64xf32, #tpu.memory_space<vmem>>, vector<1x64xf32>,
    return
  }
  func.func @transform_0(%arg0: i32, %arg1: i32) -> (i32, i32) {
    %c0_i32 = arith.constant 0 : i32
    %c0_i32_0 = arith.constant 0 : i32
    return %arg1, %c0_i32 : i32, i32
  }
  func.func @transform_1(%arg0: i32, %arg1: i32) -> (i32, i32) {
    %c0_i32 = arith.constant 0 : i32
    %c0_i32_0 = arith.constant 0 : i32
    return %c0_i32, %arg0 : i32, i32
  }
  func.func @transform_2(%arg0: i32, %arg1: i32) -> (i32, i32) {
    %c0_i32 = arith.constant 0 : i32
    return %arg1, %arg0 : i32, i32
  }
  func.func @transform_3(%arg0: i32, %arg1: i32) -> (i32, i32) {
    %c0_i32 = arith.constant 0 : i32
    %c0_i32_0 = arith.constant 0 : i32
    return %c0_i32, %arg0 : i32, i32
  }
  func.func @transform_4(%arg0: i32, %arg1: i32) -> (i32, i32) {
    %c0_i32 = arith.constant 0 : i32
    %c0_i32_0 = arith.constant 0 : i32
    return %c0_i32, %arg0 : i32, i32
  }
}

</mosaic_0001>

<llo_original>
// kernel: tpu_custom_call.1
$region0: #{tpu_custom_call.1}
  #allocation0 [shape = 'u32[]', space=smem, size = 0x4, offset = 0x4, fixed_abs, tag = 'smem constant byte address 0x4 - core index']
  #allocation1 [shape = 'u32[144,128]{1,0:T(1,128)}', space=vmem, size = 0x12000, scoped, tag = 'internal scratch']
  %s0 = inlined_call_operand.vmem [shape: bf16[128,147], index: 0, kind: input, shape index: {}]
  %s1 = inlined_call_operand.vmem [shape: bf16[147,64], index: 1, kind: input, shape index: {}]
  %s2 = inlined_call_operand.vmem [shape: bf16[128,64], index: 2, kind: output, shape index: {0}]
  %s3 = inlined_call_operand.hbm [shape: f32[1,64], index: 3, kind: output, shape index: {1}]
  %s4 = inlined_call_operand.hbm [shape: f32[1,64], index: 4, kind: output, shape index: {2}]
  %5 = xla_tuple %s2, %s3, %s4
  %s6 = sld [smem:[#allocation0]]
  $region38: #{tpu_custom_call.1} parent=0
    _
  %s8 = ssub.s32 1, %s6
  %s9 = scalar_select 0, %s8, %s6
  $region1: #{tpu_custom_call.1} parent=0
    #allocation2 [shape = 'u8[512]{0}', space=vmem, size = 0x400, scoped, tag = 'output window, operand 1, single buffered']
    #allocation3 [shape = 's32[1]{0}', space=sflag, size = 0x4, scoped, tag = 'scoped memory for tpu_custom_call.1']
    #allocation4 [shape = 'u8[512]{0}', space=vmem, size = 0x400, scoped, tag = 'output window, operand 2, single buffered']
    #allocation5 [shape = 's32[1]{0}', space=sflag, size = 0x4, scoped, tag = 'scoped memory for tpu_custom_call.1']
    %10 = vsyncpa [#allocation3], 0
    %11 = vsyncpa [#allocation5], 0
    // Predicated region
    $region2: #{tpu_custom_call.1} parent=1 // pred_check
      _
    $region3: #{tpu_custom_call.1} parent=1 // pred_check_branch
      %13 = sbr.rel (0) target = $region5
    $region4: #{tpu_custom_call.1} parent=1 // pred_region
      _
    $region5: #{tpu_custom_call.1} parent=1 // pred_fallthru
      _
    // Predicated region
    $region6: #{tpu_custom_call.1} parent=1 // pred_check
      _
    $region7: #{tpu_custom_call.1} parent=1 // pred_check_branch
      %15 = sbr.rel (0) target = $region9
    $region8: #{tpu_custom_call.1} parent=1 // pred_region
      _
    $region9: #{tpu_custom_call.1} parent=1 // pred_fallthru
      _
    %v17 = vld [vmem:[%s0] sm:$0xff]
    %v18 = vld [vmem:[%s0 + $0x8] sm:$0xff]
    %v19 = vld [vmem:[%s0 + $0x10] sm:$0xff]
    %v20 = vld [vmem:[%s0 + $0x18] sm:$0xff]
    %v21 = vld [vmem:[%s0 + $0x20] sm:$0xff]
    %v22 = vld [vmem:[%s0 + $0x28] sm:$0xff]
    %v23 = vld [vmem:[%s0 + $0x30] sm:$0xff]
    %v24 = vld [vmem:[%s0 + $0x38] sm:$0xff]
    %v25 = vld [vmem:[%s0 + $0x40] sm:$0xff]
    %v26 = vld [vmem:[%s0 + $0x48] sm:$0xff]
    %v27 = vld [vmem:[%s0 + $0x50] sm:$0xff]
    %v28 = vld [vmem:[%s0 + $0x58] sm:$0xff]
    %v29 = vld [vmem:[%s0 + $0x60] sm:$0xff]
    %v30 = vld [vmem:[%s0 + $0x68] sm:$0xff]
    %v31 = vld [vmem:[%s0 + $0x70] sm:$0xff]
    %v32 = vld [vmem:[%s0 + $0x78] sm:$0xff]
    %v33 = vld [vmem:[%s1] sm:$0xf]
    %v34 = vld [vmem:[%s1 + $0x4] sm:$0xf]
    %v35 = vld [vmem:[%s1 + $0x8] sm:$0xf]
    %v36 = vld [vmem:[%s1 + $0xc] sm:$0xf]
    %v37 = vld [vmem:[%s1 + $0x10] sm:$0xf]
    %v38 = vld [vmem:[%s1 + $0x14] sm:$0xf]
    %v39 = vld [vmem:[%s1 + $0x18] sm:$0xf]
    %v40 = vld [vmem:[%s1 + $0x1c] sm:$0xf]
    %v41 = vld [vmem:[%s1 + $0x20] sm:$0xf]
    %v42 = vld [vmem:[%s1 + $0x24] sm:$0xf]
    %v43 = vld [vmem:[%s1 + $0x28] sm:$0xf]
    %v44 = vld [vmem:[%s1 + $0x2c] sm:$0xf]
    %v45 = vld [vmem:[%s1 + $0x30] sm:$0xf]
    %v46 = vld [vmem:[%s1 + $0x34] sm:$0xf]
    %v47 = vld [vmem:[%s1 + $0x38] sm:$0xf]
    %v48 = vld [vmem:[%s1 + $0x3c] sm:$0xf]
    %v49 = vld [vmem:[%s1 + $0x40] sm:$0xf]
    %v50 = vld [vmem:[%s1 + $0x44] sm:$0xf]
    %v51 = vld [vmem:[%s1 + $0x48] sm:$0x3]
    %v68 = vunpack.c.l.b16 %v17
    %v69 = vunpack.c.h.b16 %v17
    %v70 = vunpack.c.l.b16 %v18
    %v71 = vunpack.c.h.b16 %v18
    %v72 = vunpack.c.l.b16 %v19
    %v73 = vunpack.c.h.b16 %v19
    %v74 = vunpack.c.l.b16 %v20
    %v75 = vunpack.c.h.b16 %v20
    %v76 = vunpack.c.l.b16 %v21
    %v77 = vunpack.c.h.b16 %v21
    %v78 = vunpack.c.l.b16 %v22
    %v79 = vunpack.c.h.b16 %v22
    %v80 = vunpack.c.l.b16 %v23
    %v81 = vunpack.c.h.b16 %v23
    %v82 = vunpack.c.l.b16 %v24
    %v83 = vunpack.c.h.b16 %v24
    %v84 = vunpack.c.l.b16 %v25
    %v85 = vunpack.c.h.b16 %v25
    %v86 = vunpack.c.l.b16 %v26
    %v87 = vunpack.c.h.b16 %v26
    %v88 = vunpack.c.l.b16 %v27
    %v89 = vunpack.c.h.b16 %v27
    %v90 = vunpack.c.l.b16 %v28
    %v91 = vunpack.c.h.b16 %v28
    %v92 = vunpack.c.l.b16 %v29
    %v93 = vunpack.c.h.b16 %v29
    %v94 = vunpack.c.l.b16 %v30
    %v95 = vunpack.c.h.b16 %v30
    %v96 = vunpack.c.l.b16 %v31
    %v97 = vunpack.c.h.b16 %v31
    %v98 = vunpack.c.l.b16 %v32
    %v99 = vunpack.c.h.b16 %v32
    %v100 = vpack.c.b16 %v70, %v68
    %v101 = vpack.c.b16 %v71, %v69
    %v102 = vpack.c.b16 %v74, %v72
    %v103 = vpack.c.b16 %v75, %v73
    %v104 = vpack.c.b16 %v78, %v76
    %v105 = vpack.c.b16 %v79, %v77
    %v106 = vpack.c.b16 %v82, %v80
    %v107 = vpack.c.b16 %v83, %v81
    %v108 = vpack.c.b16 %v86, %v84
    %v109 = vpack.c.b16 %v87, %v85
    %v110 = vpack.c.b16 %v90, %v88
    %v111 = vpack.c.b16 %v91, %v89
    %v112 = vpack.c.b16 %v94, %v92
    %v113 = vpack.c.b16 %v95, %v93
    %v114 = vpack.c.b16 %v98, %v96
    %v115 = vpack.c.b16 %v99, %v97
    %v143 = vunpack.c.l.b16 %v33
    %v144 = vunpack.c.l.b16 %v34
    %v145 = vunpack.c.l.b16 %v35
    %v146 = vunpack.c.l.b16 %v36
    %v147 = vunpack.c.l.b16 %v37
    %v148 = vunpack.c.l.b16 %v38
    %v149 = vunpack.c.l.b16 %v39
    %v150 = vunpack.c.l.b16 %v40
    %v151 = vunpack.c.l.b16 %v41
    %v152 = vunpack.c.l.b16 %v42
    %v153 = vunpack.c.l.b16 %v43
    %v154 = vunpack.c.l.b16 %v44
    %v155 = vunpack.c.l.b16 %v45
    %v156 = vunpack.c.l.b16 %v46
    %v157 = vunpack.c.l.b16 %v47
    %v158 = vunpack.c.l.b16 %v48
    %v159 = vunpack.c.l.b16 %v49
    %v160 = vunpack.c.l.b16 %v50
    %v161 = vunpack.c.l.b16 %v51
    %v162 = vpack.c.b16 %v144, %v143
    %v163 = vpack.c.b16 %v146, %v145
    %v164 = vpack.c.b16 %v148, %v147
    %v165 = vpack.c.b16 %v150, %v149
    %v166 = vpack.c.b16 %v152, %v151
    %v167 = vpack.c.b16 %v154, %v153
    %v168 = vpack.c.b16 %v156, %v155
    %v169 = vpack.c.b16 %v158, %v157
    %v170 = vpack.c.b16 %v160, %v159
    %v171 = vpack.c.b16 %v161, %v161
    %vm181 = vcmask 154624
    %v183 = vsel %vm181, %v101, 0
    %v186 = vsel %vm181, %v103, 0
    %v189 = vsel %vm181, %v105, 0
    %v192 = vsel %vm181, %v107, 0
    %v195 = vsel %vm181, %v109, 0
    %v198 = vsel %vm181, %v111, 0
    %v201 = vsel %vm181, %v113, 0
    %v204 = vsel %vm181, %v115, 0
    %vm206 = vcmask 1040384
    %vm207 = vcmask 1041408
    %v208 = vsel %vm206, 4294967295, 65535
    %v209 = vsel %vm207, %v208, 0
    %v211 = vand.u32 %v171, %v209
    %213 = vmatprep.subr.bf16.mxu0 0
    %214 = vmatpush1.bf16.msra.mxu0 %v162
    %215 = vmatprep.subr.bf16.mxu0 0
    %216 = vmatpush1.bf16.msra.mxu0 %v163
    %217 = vmatprep.subr.bf16.mxu0 0
    %218 = vmatpush1.bf16.msra.mxu0 %v164
    %219 = vmatprep.subr.bf16.mxu0 0
    %220 = vmatpush1.bf16.msra.mxu0 %v165
    %221 = vmatprep.subr.bf16.mxu0 0
    %222 = vmatpush1.bf16.msra.mxu0 %v166
    %223 = vmatprep.subr.bf16.mxu0 0
    %224 = vmatpush1.bf16.msra.mxu0 %v167
    %225 = vmatprep.subr.bf16.mxu0 0
    %226 = vmatpush1.bf16.msra.mxu0 %v168
    %227 = vmatprep.subr.bf16.mxu0 0
    %228 = vmatpush1.bf16.msra.mxu0 %v169
    %229 = vmatprep.subr.bf16.mxu0 0
    %230 = vmatpush1.bf16.msra.mxu0 %v170
    %231 = vmatprep.subr.bf16.mxu0 0
    %232 = vmatpush1.bf16.msra.mxu0 %v211
    %233 = vmatprep.subr.bf16.mxu0 0
    %234 = vmatpush1.bf16.msra.mxu0 0
    %235 = vmatprep.subr.bf16.mxu0 0
    %236 = vmatpush1.bf16.msra.mxu0 0
    %237 = vmatprep.subr.bf16.mxu0 0
    %238 = vmatpush1.bf16.msra.mxu0 0
    %239 = vmatprep.subr.bf16.mxu0 0
    %240 = vmatpush1.bf16.msra.mxu0 0
    %241 = vmatprep.subr.bf16.mxu0 0
    %242 = vmatpush1.bf16.msra.mxu0 0
    %243 = vmatprep.subr.bf16.mxu0 0
    %244 = vmatpush1.bf16.msra.mxu0 0
    %245 = vmatprep.mubr.bf16.mxu0 %v183
    %246 = vmatmul.mubr.bf16.gmra.mrb[0].mxu0 %v100
    %v247 = vpop.f32.mrb[0].mxu0
    %v248 = vadd.f32 0.0, %v247
    %v249 = vpop.f32.mrb[0].mxu0
    %v250 = vpop.f32.mrb[0].mxu0
    %v251 = vadd.f32 0.0, %v250
    %v252 = vpop.f32.mrb[0].mxu0
    %253 = vmatprep.mubr.bf16.mxu0 %v186
    %254 = vmatmul.mubr.bf16.gmra.mrb[0].mxu0 %v102
    %v255 = vpop.f32.mrb[0].mxu0
    %v256 = vadd.f32 0.0, %v255
    %v257 = vpop.f32.mrb[0].mxu0
    %v258 = vpop.f32.mrb[0].mxu0
    %v259 = vadd.f32 0.0, %v258
    %v260 = vpop.f32.mrb[0].mxu0
    %261 = vmatprep.mubr.bf16.mxu0 %v189
    %262 = vmatmul.mubr.bf16.gmra.mrb[0].mxu0 %v104
    %v263 = vpop.f32.mrb[0].mxu0
    %v264 = vadd.f32 0.0, %v263
    %v265 = vpop.f32.mrb[0].mxu0
    %v266 = vpop.f32.mrb[0].mxu0
    %v267 = vadd.f32 0.0, %v266
    %v268 = vpop.f32.mrb[0].mxu0
    %269 = vmatprep.mubr.bf16.mxu0 %v192
    %270 = vmatmul.mubr.bf16.gmra.mrb[0].mxu0 %v106
    %v271 = vpop.f32.mrb[0].mxu0
    %v272 = vadd.f32 0.0, %v271
    %v273 = vpop.f32.mrb[0].mxu0
    %v274 = vpop.f32.mrb[0].mxu0
    %v275 = vadd.f32 0.0, %v274
    %v276 = vpop.f32.mrb[0].mxu0
    %277 = vmatprep.mubr.bf16.mxu0 %v195
    %278 = vmatmul.mubr.bf16.gmra.mrb[0].mxu0 %v108
    %v279 = vpop.f32.mrb[0].mxu0
    %v280 = vadd.f32 0.0, %v279
    %v281 = vpop.f32.mrb[0].mxu0
    %v282 = vpop.f32.mrb[0].mxu0
    %v283 = vadd.f32 0.0, %v282
    %v284 = vpop.f32.mrb[0].mxu0
    %285 = vmatprep.mubr.bf16.mxu0 %v198
    %286 = vmatmul.mubr.bf16.gmra.mrb[0].mxu0 %v110
    %v287 = vpop.f32.mrb[0].mxu0
    %v288 = vadd.f32 0.0, %v287
    %v289 = vpop.f32.mrb[0].mxu0
    %v290 = vpop.f32.mrb[0].mxu0
    %v291 = vadd.f32 0.0, %v290
    %v292 = vpop.f32.mrb[0].mxu0
    %293 = vmatprep.mubr.bf16.mxu0 %v201
    %294 = vmatmul.mubr.bf16.gmra.mrb[0].mxu0 %v112
    %v295 = vpop.f32.mrb[0].mxu0
    %v296 = vadd.f32 0.0, %v295
    %v297 = vpop.f32.mrb[0].mxu0
    %v298 = vpop.f32.mrb[0].mxu0
    %v299 = vadd.f32 0.0, %v298
    %v300 = vpop.f32.mrb[0].mxu0
    %301 = vmatprep.mubr.bf16.mxu0 %v204
    %302 = vmatmul.mubr.bf16.gmra.mrb[0].mxu0 %v114
    %v303 = vpop.f32.mrb[0].mxu0
    %v304 = vadd.f32 0.0, %v303
    %v305 = vpop.f32.mrb[0].mxu0
    %v306 = vpop.f32.mrb[0].mxu0
    %v307 = vadd.f32 0.0, %v306
    %v308 = vpop.f32.mrb[0].mxu0
    %309 = vdwg.mxu0
    %v310 = vpack.c.bf16 %v251, %v248
    %v311 = vpack.c.bf16 %v259, %v256
    %v312 = vpack.c.bf16 %v267, %v264
    %v313 = vpack.c.bf16 %v275, %v272
    %v314 = vpack.c.bf16 %v283, %v280
    %v315 = vpack.c.bf16 %v291, %v288
    %v316 = vpack.c.bf16 %v299, %v296
    %v317 = vpack.c.bf16 %v307, %v304
    %v326 = vunpack.c.l.b16 %v310
    %v327 = vunpack.c.h.b16 %v310
    %v328 = vunpack.c.l.b16 %v311
    %v329 = vunpack.c.h.b16 %v311
    %v330 = vunpack.c.l.b16 %v312
    %v331 = vunpack.c.h.b16 %v312
    %v332 = vunpack.c.l.b16 %v313
    %v333 = vunpack.c.h.b16 %v313
    %v334 = vunpack.c.l.b16 %v314
    %v335 = vunpack.c.h.b16 %v314
    %v336 = vunpack.c.l.b16 %v315
    %v337 = vunpack.c.h.b16 %v315
    %v338 = vunpack.c.l.b16 %v316
    %v339 = vunpack.c.h.b16 %v316
    %v340 = vunpack.c.l.b16 %v317
    %v341 = vunpack.c.h.b16 %v317
    %v342 = vpack.c.b16 %v326, %v326
    %v343 = vpack.c.b16 %v327, %v327
    %v344 = vpack.c.b16 %v328, %v328
    %v345 = vpack.c.b16 %v329, %v329
    %v346 = vpack.c.b16 %v330, %v330
    %v347 = vpack.c.b16 %v331, %v331
    %v348 = vpack.c.b16 %v332, %v332
    %v349 = vpack.c.b16 %v333, %v333
    %v350 = vpack.c.b16 %v334, %v334
    %v351 = vpack.c.b16 %v335, %v335
    %v352 = vpack.c.b16 %v336, %v336
    %v353 = vpack.c.b16 %v337, %v337
    %v354 = vpack.c.b16 %v338, %v338
    %v355 = vpack.c.b16 %v339, %v339
    %v356 = vpack.c.b16 %v340, %v340
    %v357 = vpack.c.b16 %v341, %v341
    %vm374 = vcmask 519168
    %375 = vst.msk [vmem:[%s2] sm:$0xf] %vm374, %v342
    %376 = vst.msk [vmem:[%s2 + $0x4] sm:$0xf] %vm374, %v343
    %377 = vst.msk [vmem:[%s2 + $0x8] sm:$0xf] %vm374, %v344
    %378 = vst.msk [vmem:[%s2 + $0xc] sm:$0xf] %vm374, %v345
    %379 = vst.msk [vmem:[%s2 + $0x10] sm:$0xf] %vm374, %v346
    %380 = vst.msk [vmem:[%s2 + $0x14] sm:$0xf] %vm374, %v347
    %381 = vst.msk [vmem:[%s2 + $0x18] sm:$0xf] %vm374, %v348
    %382 = vst.msk [vmem:[%s2 + $0x1c] sm:$0xf] %vm374, %v349
    %383 = vst.msk [vmem:[%s2 + $0x20] sm:$0xf] %vm374, %v350
    %384 = vst.msk [vmem:[%s2 + $0x24] sm:$0xf] %vm374, %v351
    %385 = vst.msk [vmem:[%s2 + $0x28] sm:$0xf] %vm374, %v352
    %386 = vst.msk [vmem:[%s2 + $0x2c] sm:$0xf] %vm374, %v353
    %387 = vst.msk [vmem:[%s2 + $0x30] sm:$0xf] %vm374, %v354
    %388 = vst.msk [vmem:[%s2 + $0x34] sm:$0xf] %vm374, %v355
    %389 = vst.msk [vmem:[%s2 + $0x38] sm:$0xf] %vm374, %v356
    %390 = vst.msk [vmem:[%s2 + $0x3c] sm:$0xf] %vm374, %v357
    %p391 = scmp.eq.s32.totalorder 0, 0
    // Predicated region
    $region10: #{tpu_custom_call.1} parent=1 // pred_check
      %p392 = pneg %p391
    $region11: #{tpu_custom_call.1} parent=1 // pred_check_branch
      %394 = sbr.rel (%p392) target = $region13
    $region12: #{tpu_custom_call.1} parent=1 // pred_region
      %vm395 = vcmask 516096
      %396 = vst.msk [vmem:[#allocation2] sm:$0x1] %vm395, 0.0
      %397 = vst.msk [vmem:[#allocation4] sm:$0x1] %vm395, 0.0
    $region13: #{tpu_custom_call.1} parent=1 // pred_fallthru
      _
    %v398 = vld [vmem:[#allocation2] sm:$0x1]
    %vm399 = vcmask 523264
    %v400 = vsel %vm399, %v248, 0.0
    %v401 = vsel %vm399, %v251, 0.0
    %v402 = vadd.f32 %v400, %v401
    %v403 = vsel %vm399, %v256, 0.0
    %v404 = vadd.f32 %v402, %v403
    %v405 = vsel %vm399, %v259, 0.0
    %v406 = vadd.f32 %v404, %v405
    %v407 = vsel %vm399, %v264, 0.0
    %v408 = vadd.f32 %v406, %v407
    %v409 = vsel %vm399, %v267, 0.0
    %v410 = vadd.f32 %v408, %v409
    %v411 = vsel %vm399, %v272, 0.0
    %v412 = vadd.f32 %v410, %v411
    %v413 = vsel %vm399, %v275, 0.0
    %v414 = vadd.f32 %v412, %v413
    %v415 = vsel %vm399, %v280, 0.0
    %v416 = vadd.f32 %v414, %v415
    %v417 = vsel %vm399, %v283, 0.0
    %v418 = vadd.f32 %v416, %v417
    %v419 = vsel %vm399, %v288, 0.0
    %v420 = vadd.f32 %v418, %v419
    %v421 = vsel %vm399, %v291, 0.0
    %v422 = vadd.f32 %v420, %v421
    %v423 = vsel %vm399, %v296, 0.0
    %v424 = vadd.f32 %v422, %v423
    %v425 = vsel %vm399, %v299, 0.0
    %v426 = vadd.f32 %v424, %v425
    %v427 = vsel %vm399, %v304, 0.0
    %v428 = vadd.f32 %v426, %v427
    %v429 = vsel %vm399, %v307, 0.0
    %v430 = vadd.f32 %v428, %v429
    %v431 = vrot.slane %v430, 4
    %v432 = vadd.f32 %v430, %v431
    %v433 = vrot.slane %v432, 2
    %v434 = vadd.f32 %v432, %v433
    %v435 = vrot.slane %v434, 1
    %v436 = vadd.f32 %v434, %v435
    %v437 = vadd.f32 %v398, %v436
    %vm438 = vcmask 516096
    %439 = vst.msk [vmem:[#allocation2] sm:$0x1] %vm438, %v437
    %v440 = vld [vmem:[#allocation4] sm:$0x1]
    %v441 = vmul.f32 %v248, %v248
    %v442 = vmul.f32 %v251, %v251
    %v443 = vmul.f32 %v256, %v256
    %v444 = vmul.f32 %v259, %v259
    %v445 = vmul.f32 %v264, %v264
    %v446 = vmul.f32 %v267, %v267
    %v447 = vmul.f32 %v272, %v272
    %v448 = vmul.f32 %v275, %v275
    %v449 = vmul.f32 %v280, %v280
    %v450 = vmul.f32 %v283, %v283
    %v451 = vmul.f32 %v288, %v288
    %v452 = vmul.f32 %v291, %v291
    %v453 = vmul.f32 %v296, %v296
    %v454 = vmul.f32 %v299, %v299
    %v455 = vmul.f32 %v304, %v304
    %v456 = vmul.f32 %v307, %v307
    %v457 = vsel %vm399, %v441, 0.0
    %v458 = vsel %vm399, %v442, 0.0
    %v459 = vadd.f32 %v457, %v458
    %v460 = vsel %vm399, %v443, 0.0
    %v461 = vadd.f32 %v459, %v460
    %v462 = vsel %vm399, %v444, 0.0
    %v463 = vadd.f32 %v461, %v462
    %v464 = vsel %vm399, %v445, 0.0
    %v465 = vadd.f32 %v463, %v464
    %v466 = vsel %vm399, %v446, 0.0
    %v467 = vadd.f32 %v465, %v466
    %v468 = vsel %vm399, %v447, 0.0
    %v469 = vadd.f32 %v467, %v468
    %v470 = vsel %vm399, %v448, 0.0
    %v471 = vadd.f32 %v469, %v470
    %v472 = vsel %vm399, %v449, 0.0
    %v473 = vadd.f32 %v471, %v472
    %v474 = vsel %vm399, %v450, 0.0
    %v475 = vadd.f32 %v473, %v474
    %v476 = vsel %vm399, %v451, 0.0
    %v477 = vadd.f32 %v475, %v476
    %v478 = vsel %vm399, %v452, 0.0
    %v479 = vadd.f32 %v477, %v478
    %v480 = vsel %vm399, %v453, 0.0
    %v481 = vadd.f32 %v479, %v480
    %v482 = vsel %vm399, %v454, 0.0
    %v483 = vadd.f32 %v481, %v482
    %v484 = vsel %vm399, %v455, 0.0
    %v485 = vadd.f32 %v483, %v484
    %v486 = vsel %vm399, %v456, 0.0
    %v487 = vadd.f32 %v485, %v486
    %v488 = vrot.slane %v487, 4
    %v489 = vadd.f32 %v487, %v488
    %v490 = vrot.slane %v489, 2
    %v491 = vadd.f32 %v489, %v490
    %v492 = vrot.slane %v491, 1
    %v493 = vadd.f32 %v491, %v492
    %v494 = vadd.f32 %v440, %v493
    %495 = vst.msk [vmem:[#allocation4] sm:$0x1] %vm438, %v494
    // Predicated region
    $region14: #{tpu_custom_call.1} parent=1 // pred_check
      _
    $region15: #{tpu_custom_call.1} parent=1 // pred_check_branch
      %497 = sbr.rel (0) target = $region17
    $region16: #{tpu_custom_call.1} parent=1 // pred_region
      _
    $region17: #{tpu_custom_call.1} parent=1 // pred_fallthru
      _
    // Predicated region
    $region18: #{tpu_custom_call.1} parent=1 // pred_check
      _
    $region19: #{tpu_custom_call.1} parent=1 // pred_check_branch
      %499 = sbr.rel (0) target = $region21
    $region20: #{tpu_custom_call.1} parent=1 // pred_region
      %s501 = ssub.s32 16, 16
      %502 = vsyncadd [#allocation3], %s501
      %s504 = sshll.u32 [#allocation2], 4
      %s505 = int_to_ptr.vmem [resolvable:$true] %s504
      %507 = dma.vmem_to_hbm [thread:$0]  %s505, 16, %s3, [#allocation3]
    $region21: #{tpu_custom_call.1} parent=1 // pred_fallthru
      _
    // Predicated region
    $region22: #{tpu_custom_call.1} parent=1 // pred_check
      _
    $region23: #{tpu_custom_call.1} parent=1 // pred_check_branch
      %509 = sbr.rel (0) target = $region25
    $region24: #{tpu_custom_call.1} parent=1 // pred_region
      %s511 = ssub.s32 16, 16
      %512 = vsyncadd [#allocation5], %s511
      %s514 = sshll.u32 [#allocation4], 4
      %s515 = int_to_ptr.vmem [resolvable:$true] %s514
      %517 = dma.vmem_to_hbm [thread:$0]  %s515, 16, %s4, [#allocation5]
    $region25: #{tpu_custom_call.1} parent=1 // pred_fallthru
      _
    // Predicated region
    $region26: #{tpu_custom_call.1} parent=1 // pred_check
      _
    $region27: #{tpu_custom_call.1} parent=1 // pred_check_branch
      %519 = sbr.rel (0) target = $region29
    $region28: #{tpu_custom_call.1} parent=1 // pred_region
      _
    $region29: #{tpu_custom_call.1} parent=1 // pred_fallthru
      _
    // Predicated region
    $region30: #{tpu_custom_call.1} parent=1 // pred_check
      _
    $region31: #{tpu_custom_call.1} parent=1 // pred_check_branch
      %521 = sbr.rel (0) target = $region33
    $region32: #{tpu_custom_call.1} parent=1 // pred_region
      %522 = dma.done [#allocation3], 16
    $region33: #{tpu_custom_call.1} parent=1 // pred_fallthru
      _
    // Predicated region
    $region34: #{tpu_custom_call.1} parent=1 // pred_check
      _
    $region35: #{tpu_custom_call.1} parent=1 // pred_check_branch
      %524 = sbr.rel (0) target = $region37
    $region36: #{tpu_custom_call.1} parent=1 // pred_region
      %525 = dma.done [#allocation5], 16
    $region37: #{tpu_custom_call.1} parent=1 // pred_fallthru
      _
    %526 = vsyncpa [#allocation3], 1
    %527 = vsyncpa [#allocation5], 1

</llo_original>
